<compile_context>
chip_gen: v6e
topology: v6e:2x2x1
jax: 0.10.0
libtpu: 0.0.40
codegen_flags: <defaults>
</compile_context>

<pallas_src>
import functools
import math

import jax
import jax.numpy as jnp
from jax import lax
from jax.experimental import pallas as pl
from jax.experimental.pallas import tpu as pltpu


# ---------------------------------------------------------------------------
# Per-head online-softmax attention (operands bf16, accumulation/softmax f32).
#   q, k, v : (N, Dh) bf16 (q already pre-scaled by Dh**-0.5 via the weights)
#   returns : (N, Dh) f32
# ---------------------------------------------------------------------------
def _flash_head_attention(q, k, v, kv_tile):
    n_q, d_h = q.shape
    n_kv = k.shape[0]
    num_tiles = -(-n_kv // kv_tile)

    m = jnp.full((n_q, 1), -jnp.inf, dtype=jnp.float32)
    l = jnp.zeros((n_q, 1), dtype=jnp.float32)
    acc = jnp.zeros((n_q, d_h), dtype=jnp.float32)

    for t in range(num_tiles):
        start = t * kv_tile
        size = min(kv_tile, n_kv - start)
        k_t = k[start:start + size, :]
        v_t = v[start:start + size, :]

        # q @ k_t.T without materializing a transposed copy of K.
        s = lax.dot_general(q, k_t,
                            dimension_numbers=(((1,), (1,)), ((), ())),
                            preferred_element_type=jnp.float32)   # (N, size) f32

        m_new = jnp.maximum(m, jnp.max(s, axis=-1, keepdims=True))
        alpha = jnp.exp(m - m_new)
        p = jnp.exp(s - m_new)                                    # f32
        l = alpha * l + jnp.sum(p, axis=-1, keepdims=True)
        acc = alpha * acc + jnp.dot(p.astype(jnp.bfloat16), v_t,
                                    preferred_element_type=jnp.float32)
        m = m_new

    # Single deferred normalization; approximate reciprocal runs on the EUP.
    return acc * pl.reciprocal(l, approx=True)


# ---------------------------------------------------------------------------
# Fused kernel: one grid step per (batch, head).
#   x_ref    : (N, C)       tokens for batch b (f32, cast to bf16 in-kernel)
#   wqkv_ref : (C, 3*Dh)    this head's [q|k|v] projection columns, bf16,
#                           softmax scale folded into the q columns
#   bqkv_ref : (1, 3*Dh)    this head's qkv bias (only present if qkv_bias)
#   wo_ref   : (Dh, C)      this head's rows of W_proj.T, bf16
#   bo_ref   : (1, C)       proj bias, f32
#   o_ref    : (N, C)       output tokens for batch b
#   acc_ref  : (N, C) f32   VMEM scratch accumulating sum_h ctx_h @ Wo_h
# ---------------------------------------------------------------------------
def _attention_kernel(x_ref, wqkv_ref, *refs, num_heads, kv_tile, has_qkv_bias):
    if has_qkv_bias:
        bqkv_ref, wo_ref, bo_ref, o_ref, acc_ref = refs
    else:
        bqkv_ref = None
        wo_ref, bo_ref, o_ref, acc_ref = refs

    h = pl.program_id(1)

    @pl.when(h == 0)
    def _init():
        acc_ref[...] = jnp.zeros_like(acc_ref)

    # --- this head's slice of the QKV projection (bf16 MXU, f32 accum) -----
    x = x_ref[...].astype(jnp.bfloat16)                           # (N, C)
    qkv = jnp.dot(x, wqkv_ref[...],
                  preferred_element_type=jnp.float32)             # (N, 3*Dh) f32
    if has_qkv_bias:
        qkv = qkv + bqkv_ref[...]

    d_h = wqkv_ref.shape[-1] // 3
    q = qkv[:, 0 * d_h:1 * d_h].astype(jnp.bfloat16)
    k = qkv[:, 1 * d_h:2 * d_h].astype(jnp.bfloat16)
    v = qkv[:, 2 * d_h:3 * d_h].astype(jnp.bfloat16)

    # --- scaled-dot-product attention for this head (online softmax) -------
    ctx = _flash_head_attention(q, k, v, kv_tile)                 # (N, Dh) f32
    # attn_drop: p = 0.0 -> identity (eval mode)

    # --- accumulate this head's contribution to the output projection ------
    acc_ref[...] += jnp.dot(ctx.astype(jnp.bfloat16), wo_ref[...],
                            preferred_element_type=jnp.float32)   # (N, C) f32

    @pl.when(h == num_heads - 1)
    def _finalize():
        # proj_drop: p = 0.0 -> identity (eval mode)
        o_ref[...] = (acc_ref[...] + bo_ref[...]).astype(o_ref.dtype)


def attention_forward(x, w_qkv, b_qkv, w_proj, b_proj, num_heads, *, kv_tile=512):
    """Attention.forward (eval mode).

    x      : (B, N, C) float32
    w_qkv  : (3C, C)   torch nn.Linear weight (out_features, in_features)
    b_qkv  : (3C,) or None
    w_proj : (C, C)
    b_proj : (C,)
    returns: (B, N, C) float32
    """
    B, N, C = x.shape
    H = num_heads
    assert C % H == 0, (C, H)
    Dh = C // H
    scale = float(Dh) ** -0.5
    has_qkv_bias = b_qkv is not None
    kv_tile = int(min(kv_tile, N))

    # ---- one-time weight-sized layout prep (no per-activation work) -------
    wt = jnp.asarray(w_qkv, dtype=jnp.float32).T                  # (C, 3C)
    wq = wt[:, 0 * C:1 * C].reshape(C, H, Dh) * scale             # fold softmax scale
    wk = wt[:, 1 * C:2 * C].reshape(C, H, Dh)
    wv = wt[:, 2 * C:3 * C].reshape(C, H, Dh)
    wqkv_heads = jnp.concatenate([wq, wk, wv], axis=-1)           # (C, H, 3*Dh)
    wqkv_heads = jnp.transpose(wqkv_heads, (1, 0, 2)).astype(jnp.bfloat16)  # (H, C, 3*Dh)

    wo_heads = (jnp.asarray(w_proj, dtype=jnp.float32).T
                .reshape(H, Dh, C).astype(jnp.bfloat16))          # (H, Dh, C)
    bo = jnp.asarray(b_proj, dtype=jnp.float32).reshape(1, C)

    inputs = [x, wqkv_heads]
    in_specs = [
        pl.BlockSpec((pl.Squeezed(), N, C), lambda b, h: (b, 0, 0)),
        pl.BlockSpec((pl.Squeezed(), C, 3 * Dh), lambda b, h: (h, 0, 0)),
    ]
    if has_qkv_bias:
        bq = jnp.asarray(b_qkv, dtype=jnp.float32)
        bqh = bq[0 * C:1 * C].reshape(H, Dh) * scale              # fold scale into q bias
        bkh = bq[1 * C:2 * C].reshape(H, Dh)
        bvh = bq[2 * C:3 * C].reshape(H, Dh)
        bqkv_heads = jnp.concatenate([bqh, bkh, bvh], axis=-1).reshape(H, 1, 3 * Dh)
        inputs.append(bqkv_heads)
        in_specs.append(
            pl.BlockSpec((pl.Squeezed(), 1, 3 * Dh), lambda b, h: (h, 0, 0)))
    inputs += [wo_heads, bo]
    in_specs += [
        pl.BlockSpec((pl.Squeezed(), Dh, C), lambda b, h: (h, 0, 0)),
        pl.BlockSpec((1, C), lambda b, h: (0, 0)),
    ]

    # ---- explicit per-generation VMEM budget -------------------------------
    try:
        vmem_cap = int(pltpu.get_tpu_info().vmem_capacity_bytes)
    except Exception:
        vmem_cap = 64 * 1024 * 1024
    vmem_limit = min(100 * 1024 * 1024, int(vmem_cap * 0.85))

    # ---- advisory cost estimate --------------------------------------------
    flops = (2 * B * N * C * 3 * C            # qkv projection
             + 2 * B * H * N * N * Dh * 2     # q@k.T and p@v
             + 2 * B * N * C * C)             # output projection
    transcendentals = B * H * (N * N + 2 * N)
    bytes_accessed = (4 * x.size                                   # x reads
                      + B * 2 * (wqkv_heads.size + wo_heads.size)  # bf16 weights per batch
                      + B * 4 * bo.size
                      + 4 * B * N * C)                             # output writes

    kernel = functools.partial(_attention_kernel, num_heads=H,
                               kv_tile=kv_tile, has_qkv_bias=has_qkv_bias)

    out = pl.pallas_call(
        kernel,
        out_shape=jax.ShapeDtypeStruct((B, N, C), jnp.float32),
        grid_spec=pltpu.PrefetchScalarGridSpec(
            num_scalar_prefetch=0,
            grid=(B, H),                       # head axis = reduction (innermost)
            in_specs=in_specs,
            out_specs=pl.BlockSpec((pl.Squeezed(), N, C), lambda b, h: (b, 0, 0)),
            scratch_shapes=[pltpu.VMEM((N, C), jnp.float32)],
        ),
        compiler_params=pltpu.CompilerParams(
            dimension_semantics=("parallel", "arbitrary"),
            vmem_limit_bytes=vmem_limit),
        cost_estimate=pl.CostEstimate(
            flops=flops,
            transcendentals=transcendentals,
            bytes_accessed=bytes_accessed),
    )(*inputs)
    return out


# ---------------------------------------------------------------------------
# Pure-JAX reference, mirroring the PyTorch code path exactly (f32).
# ---------------------------------------------------------------------------
def attention_reference(x, w_qkv, b_qkv, w_proj, b_proj, num_heads):
    B, N, C = x.shape
    H = num_heads
    Dh = C // H
    scale = float(Dh) ** -0.5

    qkv = x @ w_qkv.T
    if b_qkv is not None:
        qkv = qkv + b_qkv
    qkv = qkv.reshape(B, N, 3, H, Dh).transpose(2, 0, 3, 1, 4)    # (3, B, H, N, Dh)
    q, k, v = qkv[0], qkv[1], qkv[2]

    attn = jnp.einsum('bhnd,bhmd->bhnm', q, k) * scale
    attn = jax.nn.softmax(attn, axis=-1)
    ctx = jnp.einsum('bhnm,bhmd->bhnd', attn, v)                  # (B, H, N, Dh)
    ctx = ctx.transpose(0, 2, 1, 3).reshape(B, N, C)
    return ctx @ w_proj.T + b_proj


if __name__ == "__main__":
    # Small shapes consistent with the module: dim=32, num_heads=8, seq=16.
    B, N, C = 2, 16, 32
    H = 8                      # head_dim = 4

    key = jax.random.PRNGKey(0)
    kx, kq, kb1, kp, kb2 = jax.random.split(key, 5)
    x = jax.random.normal(kx, (B, N, C), dtype=jnp.float32)
    w_qkv = 0.05 * jax.random.normal(kq, (3 * C, C), dtype=jnp.float32)
    b_qkv = None               # qkv_bias=False (module default)
    w_proj = 0.05 * jax.random.normal(kp, (C, C), dtype=jnp.float32)
    b_proj = 0.01 * jax.random.normal(kb2, (C,), dtype=jnp.float32)

    # kv_tile=8 -> two KV tiles at N=16, exercising the online-softmax path.
    out = attention_forward(x, w_qkv, b_qkv, w_proj, b_proj, H, kv_tile=8)
    out = jax.block_until_ready(out)
    ref = attention_reference(x, w_qkv, b_qkv, w_proj, b_proj, H)
    assert out.shape == (B, N, C), out.shape
    err = float(jnp.max(jnp.abs(out - ref)))
    assert err < 2e-2, err     # bf16 MXU operands vs f32 reference

    # Second config: qkv_bias=True, single KV tile (covers the bias path).
    b_qkv2 = 0.02 * jax.random.normal(kb1, (3 * C,), dtype=jnp.float32)
    out2 = jax.block_until_ready(
        attention_forward(x, w_qkv, b_qkv2, w_proj, b_proj, H))
    ref2 = attention_reference(x, w_qkv, b_qkv2, w_proj, b_proj, H)
    err2 = float(jnp.max(jnp.abs(out2 - ref2)))
    assert err2 < 2e-2, err2

    print("KERNEL_OK")
</pallas_src>

<mosaic_0001>
module attributes {stable_mosaic.version = 11 : i64} {
  func.func @_attention_kernel(%arg0: i32, %arg1: i32, %arg2: memref<1x16x32xf32, #tpu.memory_space<vmem>>, %arg3: memref<1x32x12xbf16, #tpu.memory_space<vmem>>, %arg4: memref<1x4x32xbf16, #tpu.memory_space<vmem>>, %arg5: memref<1x32xf32, #tpu.memory_space<vmem>>, %arg6: memref<1x16x32xf32, #tpu.memory_space<vmem>>, %arg7: memref<16x32xf32, #tpu.memory_space<vmem>>) attributes {dimension_semantics = [#tpu.dimension_semantics<parallel>, #tpu.dimension_semantics<arbitrary>], iteration_bounds = array<i64: 2, 8>, scalar_prefetch = 0 : i64, scratch_operands = 1 : i64, tpu.core_type = #tpu.core_type<tc>, window_params = [{transform_indices = @transform_0, window_bounds = array<i64: 1, 16, 32>}, {transform_indices = @transform_1, window_bounds = array<i64: 1, 32, 12>}, {transform_indices = @transform_2, window_bounds = array<i64: 1, 4, 32>}, {pipeline_mode = #tpu.pipeline_mode<synchronous>, transform_indices = @transform_3, window_bounds = array<i64: 1, 32>}, {transform_indices = @transform_4, window_bounds = array<i64: 1, 16, 32>}]} {
    %c0_i32 = arith.constant 0 : i32
    %0 = arith.cmpi eq, %arg1, %c0_i32 : i32
    %1 = arith.extui %0 : i1 to i32
    %c0_i32_0 = arith.constant 0 : i32
    %2 = arith.cmpi ne, %1, %c0_i32_0 : i32
    scf.if %2 {
      %cst_26 = arith.constant 0.000000e+00 : f32
      %71 = vector.broadcast %cst_26 : f32 to vector<16x32xf32>
      %c0_27 = arith.constant 0 : index
      %c0_28 = arith.constant 0 : index
      %72 = vector.load %arg7[%c0_27, %c0_28] : memref<16x32xf32, #tpu.memory_space<vmem>>, vector<16x32xf32>
      tpu.vector_store %arg7[%c0_27, %c0_28], %71 {strides = array<i32>} : memref<16x32xf32, #tpu.memory_space<vmem>>, vector<16x32xf32>,
    } else {
    }
    %c0 = arith.constant 0 : index
    %c0_1 = arith.constant 0 : index
    %c0_2 = arith.constant 0 : index
    %3 = vector.load %arg2[%c0, %c0_1, %c0_2] : memref<1x16x32xf32, #tpu.memory_space<vmem>>, vector<1x16x32xf32>
    %4 = vector.shape_cast %3 : vector<1x16x32xf32> to vector<16x32xf32>
    %5 = arith.truncf %4 : vector<16x32xf32> to vector<16x32xbf16>
    %c0_3 = arith.constant 0 : index
    %c0_4 = arith.constant 0 : index
    %c0_5 = arith.constant 0 : index
    %6 = vector.load %arg3[%c0_3, %c0_4, %c0_5] : memref<1x32x12xbf16, #tpu.memory_space<vmem>>, vector<1x32x12xbf16>
    %7 = vector.shape_cast %6 : vector<1x32x12xbf16> to vector<32x12xbf16>
    %cst = arith.constant dense<0.000000e+00> : vector<16x12xf32>
    %8 = tpu.matmul %5, %7, %cst {dimension_numbers = #tpu.dot_dimension_numbers<[1], [0], [0], [1], [0, 0, 1, 1], [], []>} : vector<16x32xbf16>, vector<32x12xbf16>, vector<16x12xf32> -> vector<16x12xf32>
    %9 = vector.extract_strided_slice %8 {offsets = [0, 0], sizes = [16, 4], strides = [1, 1]} : vector<16x12xf32> to vector<16x4xf32>
    %10 = arith.truncf %9 : vector<16x4xf32> to vector<16x4xbf16>
    %11 = vector.extract_strided_slice %8 {offsets = [0, 4], sizes = [16, 4], strides = [1, 1]} : vector<16x12xf32> to vector<16x4xf32>
    %12 = arith.truncf %11 : vector<16x4xf32> to vector<16x4xbf16>
    %13 = vector.extract_strided_slice %8 {offsets = [0, 8], sizes = [16, 4], strides = [1, 1]} : vector<16x12xf32> to vector<16x4xf32>
    %14 = arith.truncf %13 : vector<16x4xf32> to vector<16x4xbf16>
    %cst_6 = arith.constant 0xFF800000 : f32
    %15 = vector.broadcast %cst_6 : f32 to vector<16x1xf32>
    %cst_7 = arith.constant 0.000000e+00 : f32
    %16 = vector.broadcast %cst_7 : f32 to vector<16x1xf32>
    %cst_8 = arith.constant 0.000000e+00 : f32
    %17 = vector.broadcast %cst_8 : f32 to vector<16x4xf32>
    %18 = vector.extract_strided_slice %12 {offsets = [0, 0], sizes = [8, 4], strides = [1, 1]} : vector<16x4xbf16> to vector<8x4xbf16>
    %19 = vector.extract_strided_slice %14 {offsets = [0, 0], sizes = [8, 4], strides = [1, 1]} : vector<16x4xbf16> to vector<8x4xbf16>
    %cst_9 = arith.constant dense<0.000000e+00> : vector<16x8xf32>
    %20 = tpu.matmul %10, %18, %cst_9 {dimension_numbers = #tpu.dot_dimension_numbers<[1], [1], [0], [0], [0, 0, 1, 0], [], []>} : vector<16x4xbf16>, vector<8x4xbf16>, vector<16x8xf32> -> vector<16x8xf32>
    %cst_10 = arith.constant dense<0xFF800000> : vector<16xf32>
    %21 = vector.multi_reduction <maximumf>, %20, %cst_10 [1] : vector<16x8xf32> to vector<16xf32>
    %22 = vector.shape_cast %21 : vector<16xf32> to vector<16x1xf32>
    %23 = arith.maximumf %15, %22 : vector<16x1xf32>
    %24 = arith.subf %15, %23 : vector<16x1xf32>
    %25 = math.exp %24 : vector<16x1xf32>
    %26 = vector.broadcast %23 : vector<16x1xf32> to vector<16x8xf32>
    %27 = arith.subf %20, %26 : vector<16x8xf32>
    %28 = math.exp %27 : vector<16x8xf32>
    %29 = arith.mulf %25, %16 : vector<16x1xf32>
    %cst_11 = arith.constant dense<0.000000e+00> : vector<16xf32>
    %30 = vector.multi_reduction <add>, %28, %cst_11 [1] : vector<16x8xf32> to vector<16xf32>
    %31 = vector.shape_cast %30 : vector<16xf32> to vector<16x1xf32>
    %32 = arith.addf %29, %31 : vector<16x1xf32>
    %33 = vector.broadcast %25 : vector<16x1xf32> to vector<16x4xf32>
    %34 = arith.mulf %33, %17 : vector<16x4xf32>
    %35 = arith.truncf %28 : vector<16x8xf32> to vector<16x8xbf16>
    %cst_12 = arith.constant dense<0.000000e+00> : vector<16x4xf32>
    %36 = tpu.matmul %35, %19, %cst_12 {dimension_numbers = #tpu.dot_dimension_numbers<[1], [0], [0], [1], [0, 0, 1, 1], [], []>} : vector<16x8xbf16>, vector<8x4xbf16>, vector<16x4xf32> -> vector<16x4xf32>
    %37 = arith.addf %34, %36 : vector<16x4xf32>
    %38 = vector.extract_strided_slice %12 {offsets = [8, 0], sizes = [8, 4], strides = [1, 1]} : vector<16x4xbf16> to vector<8x4xbf16>
    %39 = vector.extract_strided_slice %14 {offsets = [8, 0], sizes = [8, 4], strides = [1, 1]} : vector<16x4xbf16> to vector<8x4xbf16>
    %cst_13 = arith.constant dense<0.000000e+00> : vector<16x8xf32>
    %40 = tpu.matmul %10, %38, %cst_13 {dimension_numbers = #tpu.dot_dimension_numbers<[1], [1], [0], [0], [0, 0, 1, 0], [], []>} : vector<16x4xbf16>, vector<8x4xbf16>, vector<16x8xf32> -> vector<16x8xf32>
    %cst_14 = arith.constant dense<0xFF800000> : vector<16xf32>
    %41 = vector.multi_reduction <maximumf>, %40, %cst_14 [1] : vector<16x8xf32> to vector<16xf32>
    %42 = vector.shape_cast %41 : vector<16xf32> to vector<16x1xf32>
    %43 = arith.maximumf %23, %42 : vector<16x1xf32>
    %44 = arith.subf %23, %43 : vector<16x1xf32>
    %45 = math.exp %44 : vector<16x1xf32>
    %46 = vector.broadcast %43 : vector<16x1xf32> to vector<16x8xf32>
    %47 = arith.subf %40, %46 : vector<16x8xf32>
    %48 = math.exp %47 : vector<16x8xf32>
    %49 = arith.mulf %45, %32 : vector<16x1xf32>
    %cst_15 = arith.constant dense<0.000000e+00> : vector<16xf32>
    %50 = vector.multi_reduction <add>, %48, %cst_15 [1] : vector<16x8xf32> to vector<16xf32>
    %51 = vector.shape_cast %50 : vector<16xf32> to vector<16x1xf32>
    %52 = arith.addf %49, %51 : vector<16x1xf32>
    %53 = vector.broadcast %45 : vector<16x1xf32> to vector<16x4xf32>
    %54 = arith.mulf %53, %37 : vector<16x4xf32>
    %55 = arith.truncf %48 : vector<16x8xf32> to vector<16x8xbf16>
    %cst_16 = arith.constant dense<0.000000e+00> : vector<16x4xf32>
    %56 = tpu.matmul %55, %39, %cst_16 {dimension_numbers = #tpu.dot_dimension_numbers<[1], [0], [0], [1], [0, 0, 1, 1], [], []>} : vector<16x8xbf16>, vector<8x4xbf16>, vector<16x4xf32> -> vector<16x4xf32>
    %57 = arith.addf %54, %56 : vector<16x4xf32>
    %58 = tpu.reciprocal %52 {approx = true} : vector<16x1xf32> -> vector<16x1xf32>
    %59 = vector.broadcast %58 : vector<16x1xf32> to vector<16x4xf32>
    %60 = arith.mulf %57, %59 : vector<16x4xf32>
    %c0_17 = arith.constant 0 : index
    %c0_18 = arith.constant 0 : index
    %61 = vector.load %arg7[%c0_17, %c0_18] : memref<16x32xf32, #tpu.memory_space<vmem>>, vector<16x32xf32>
    %62 = arith.truncf %60 : vector<16x4xf32> to vector<16x4xbf16>
    %c0_19 = arith.constant 0 : index
    %c0_20 = arith.constant 0 : index
    %c0_21 = arith.constant 0 : index
    %63 = vector.load %arg4[%c0_19, %c0_20, %c0_21] : memref<1x4x32xbf16, #tpu.memory_space<vmem>>, vector<1x4x32xbf16>
    %64 = vector.shape_cast %63 : vector<1x4x32xbf16> to vector<4x32xbf16>
    %cst_22 = arith.constant dense<0.000000e+00> : vector<16x32xf32>
    %65 = tpu.matmul %62, %64, %cst_22 {dimension_numbers = #tpu.dot_dimension_numbers<[1], [0], [0], [1], [0, 0, 1, 1], [], []>} : vector<16x4xbf16>, vector<4x32xbf16>, vector<16x32xf32> -> vector<16x32xf32>
    %66 = arith.addf %61, %65 : vector<16x32xf32>
    %c0_23 = arith.constant 0 : index
    %c0_24 = arith.constant 0 : index
    %67 = vector.load %arg7[%c0_23, %c0_24] : memref<16x32xf32, #tpu.memory_space<vmem>>, vector<16x32xf32>
    tpu.vector_store %arg7[%c0_23, %c0_24], %66 {strides = array<i32>} : memref<16x32xf32, #tpu.memory_space<vmem>>, vector<16x32xf32>,
    %c7_i32 = arith.constant 7 : i32
    %68 = arith.cmpi eq, %arg1, %c7_i32 : i32
    %69 = arith.extui %68 : i1 to i32
    %c0_i32_25 = arith.constant 0 : i32
    %70 = arith.cmpi ne, %69, %c0_i32_25 : i32
    scf.if %70 {
      %c0_26 = arith.constant 0 : index
      %c0_27 = arith.constant 0 : index
      %71 = vector.load %arg7[%c0_26, %c0_27] : memref<16x32xf32, #tpu.memory_space<vmem>>, vector<16x32xf32>
      %c0_28 = arith.constant 0 : index
      %c0_29 = arith.constant 0 : index
      %72 = vector.load %arg5[%c0_28, %c0_29] : memref<1x32xf32, #tpu.memory_space<vmem>>, vector<1x32xf32>
      %73 = vector.broadcast %72 : vector<1x32xf32> to vector<16x32xf32>
      %74 = arith.addf %71, %73 : vector<16x32xf32>
      %c0_30 = arith.constant 0 : index
      %c0_31 = arith.constant 0 : index
      %c0_32 = arith.constant 0 : index
      %75 = vector.load %arg6[%c0_30, %c0_31, %c0_32] : memref<1x16x32xf32, #tpu.memory_space<vmem>>, vector<1x16x32xf32>
      %76 = vector.shape_cast %75 : vector<1x16x32xf32> to vector<16x32xf32>
      %77 = vector.shape_cast %74 : vector<16x32xf32> to vector<1x16x32xf32>
      tpu.vector_store %arg6[%c0_30, %c0_31, %c0_32], %77 {strides = array<i32>} : memref<1x16x32xf32, #tpu.memory_space<vmem>>, vector<1x16x32xf32>,
    } else {
    }
    return
  }
  func.func @transform_0(%arg0: i32, %arg1: i32) -> (i32, i32, i32) {
    %c0_i32 = arith.constant 0 : i32
    %c0_i32_0 = arith.constant 0 : i32
    %c0_i32_1 = arith.constant 0 : i32
    return %arg0, %c0_i32, %c0_i32_0 : i32, i32, i32
  }
  func.func @transform_1(%arg0: i32, %arg1: i32) -> (i32, i32, i32) {
    %c0_i32 = arith.constant 0 : i32
    %c0_i32_0 = arith.constant 0 : i32
    %c0_i32_1 = arith.constant 0 : i32
    return %arg1, %c0_i32, %c0_i32_0 : i32, i32, i32
  }
  func.func @transform_2(%arg0: i32, %arg1: i32) -> (i32, i32, i32) {
    %c0_i32 = arith.constant 0 : i32
    %c0_i32_0 = arith.constant 0 : i32
    %c0_i32_1 = arith.constant 0 : i32
    return %arg1, %c0_i32, %c0_i32_0 : i32, i32, i32
  }
  func.func @transform_3(%arg0: i32, %arg1: i32) -> (i32, i32) {
    %c0_i32 = arith.constant 0 : i32
    %c0_i32_0 = arith.constant 0 : i32
    %c0_i32_1 = arith.constant 0 : i32
    return %c0_i32, %c0_i32_0 : i32, i32
  }
  func.func @transform_4(%arg0: i32, %arg1: i32) -> (i32, i32, i32) {
    %c0_i32 = arith.constant 0 : i32
    %c0_i32_0 = arith.constant 0 : i32
    %c0_i32_1 = arith.constant 0 : i32
    return %arg0, %c0_i32, %c0_i32_0 : i32, i32, i32
  }
}

</mosaic_0001>

<llo_original>
// kernel: tpu_custom_call.1
$region0: #{tpu_custom_call.1}
  #allocation0 [shape = 'u32[]', space=smem, size = 0x4, offset = 0x4, fixed_abs, tag = 'smem constant byte address 0x4 - core index']
  #allocation1 [shape = 'u32[144,128]{1,0:T(1,128)}', space=vmem, size = 0x12000, scoped, tag = 'internal scratch']
  #allocation2 [shape = 'f32[16,32]{1,0:T(8,128)}', space=vmem, size = 0x2000, scoped, tag = 'scratch operand']
  %s0 = inlined_call_operand.vmem [shape: f32[2,16,32], index: 0, kind: input, shape index: {}]
  %s1 = inlined_call_operand.vmem [shape: bf16[8,32,12], index: 1, kind: input, shape index: {}]
  %s2 = inlined_call_operand.vmem [shape: bf16[8,4,32], index: 2, kind: input, shape index: {}]
  %s3 = inlined_call_operand.vmem [shape: f32[1,32], index: 3, kind: input, shape index: {}]
  %s4 = inlined_call_operand.hbm [shape: f32[2,16,32], index: 4, kind: output, shape index: {}]
  %s5 = sld [smem:[#allocation0]]
  $region57: #{tpu_custom_call.1} parent=0
    _
  %s7 = ssub.s32 1, %s5
  %s8 = scalar_select 0, %s7, %s5
  $region1: #{tpu_custom_call.1} parent=0
    #allocation3 [shape = 'u8[16384]{0}', space=vmem, size = 0x4000, scoped, tag = 'output window, operand 0']
    #allocation4 [shape = 's32[2]{0}', space=sflag, size = 0x8, scoped, tag = 'scoped memory for tpu_custom_call.1']
    %9 = vsyncpa [#allocation4], 0
    %s10 = scalar_lea.sflag [#allocation4], 1
    %11 = vsyncpa %s10, 0
    loop: start=0, step=1, limit=18
    $region2: #{tpu_custom_call.1} parent=1 // loop_pre_header
      _
    $region3: #{tpu_custom_call.1} parent=1 // loop_header
      %s13 = sphi 0, %s17
      %p14 = scmp.ge.s32.totalorder %s13, 18
      %s20 = sphi 0, %s32
      %s21 = sphi 0, %s28
      %s22 = sphi 0, %s20
      %s23 = sphi 0, %s21
      %s24 = sphi 0, %s22
      %s25 = sphi 0, %s23
      %s35 = sphi 0, %s37
      %s38 = sphi 0, %s35
      %s39 = sphi 0, %s38
      %s55 = sphi 0, %s39
      %s61 = sphi 0, %s63
      %s64 = sphi 0, %s61
      %s65 = sphi 0, %s64
      %s81 = sphi 0, %s65
      %s87 = sphi 0, %s89
      %s90 = sphi 0, %s87
      %s91 = sphi 0, %s90
      %s107 = sphi 0, %s91
      %s111 = sphi 0, %s111
      %s113 = sphi 0, %s111
      %s114 = sphi 0, %s113
      %s128 = sphi 0, %s114
      %s134 = sphi 0, %s136
      %s137 = sphi 0, %s134
      %s138 = sphi 0, %s137
      %s154 = sphi 0, %s138
    $region4: #{tpu_custom_call.1} parent=1 // loop_header_branch
      %16 = sbr.rel (%p14) target = $region8
    $region5: #{tpu_custom_call.1} parent=1 // loop_body
      %s18 = ssub.s32 %s13, 1
      %s19 = ssub.s32 %s13, 2
      %s26 = sadd.s32 1, %s21
      %p27 = scmp.ge.s32.totalorder %s26, 8
      %s28 = scalar_select %p27, 0, %s26
      %s29 = sadd.s32 1, %s20
      %s30 = scalar_select %p27, %s29, %s20
      %p31 = scmp.ge.s32.totalorder %s30, 2
      %s32 = scalar_select %p31, 0, %s30
      %s33 = ssub.s32 %s20, %s32
      %p34 = scmp.eq.s32.totalorder %s33, 0
      %s36 = sadd.s32 %s35, 1
      %s37 = scalar_select %p34, %s35, %s36
      %p40 = pneg %p34
      %p41 = scmp.eq.s32.totalorder %s13, 15
      %p42 = por %p40, %p41
      %p43 = scmp.ne.s32.totalorder %s35, %s38
      %p44 = scmp.eq.s32.totalorder %s13, 0
      %p45 = por %p43, %p44
      %p46 = scmp.ne.s32.totalorder %s35, %s38
      %p47 = scmp.eq.s32.totalorder %s18, 15
      %p48 = por %p46, %p47
      %p49 = scmp.ne.s32.totalorder %s38, %s39
      %p50 = scmp.eq.s32.totalorder %s18, 0
      %p51 = por %p49, %p50
      %p52 = scmp.ne.s32.totalorder %s38, %s39
      %p53 = scmp.eq.s32.totalorder %s19, 15
      %p54 = por %p52, %p53
      %p56 = scmp.ne.s32.totalorder %s39, %s55
      %p57 = scmp.eq.s32.totalorder %s19, 0
      %p58 = por %p56, %p57
      %s59 = ssub.s32 %s21, %s28
      %p60 = scmp.eq.s32.totalorder %s59, 0
      %s62 = sadd.s32 %s61, 1
      %s63 = scalar_select %p60, %s61, %s62
      %p66 = pneg %p60
      %p67 = scmp.eq.s32.totalorder %s13, 15
      %p68 = por %p66, %p67
      %p69 = scmp.ne.s32.totalorder %s61, %s64
      %p70 = scmp.eq.s32.totalorder %s13, 0
      %p71 = por %p69, %p70
      %p72 = scmp.ne.s32.totalorder %s61, %s64
      %p73 = scmp.eq.s32.totalorder %s18, 15
      %p74 = por %p72, %p73
      %p75 = scmp.ne.s32.totalorder %s64, %s65
      %p76 = scmp.eq.s32.totalorder %s18, 0
      %p77 = por %p75, %p76
      %p78 = scmp.ne.s32.totalorder %s64, %s65
      %p79 = scmp.eq.s32.totalorder %s19, 15
      %p80 = por %p78, %p79
      %p82 = scmp.ne.s32.totalorder %s65, %s81
      %p83 = scmp.eq.s32.totalorder %s19, 0
      %p84 = por %p82, %p83
      %s85 = ssub.s32 %s21, %s28
      %p86 = scmp.eq.s32.totalorder %s85, 0
      %s88 = sadd.s32 %s87, 1
      %s89 = scalar_select %p86, %s87, %s88
      %p92 = pneg %p86
      %p93 = scmp.eq.s32.totalorder %s13, 15
      %p94 = por %p92, %p93
      %p95 = scmp.ne.s32.totalorder %s87, %s90
      %p96 = scmp.eq.s32.totalorder %s13, 0
      %p97 = por %p95, %p96
      %p98 = scmp.ne.s32.totalorder %s87, %s90
      %p99 = scmp.eq.s32.totalorder %s18, 15
      %p100 = por %p98, %p99
      %p101 = scmp.ne.s32.totalorder %s90, %s91
      %p102 = scmp.eq.s32.totalorder %s18, 0
      %p103 = por %p101, %p102
      %p104 = scmp.ne.s32.totalorder %s90, %s91
      %p105 = scmp.eq.s32.totalorder %s19, 15
      %p106 = por %p104, %p105
      %p108 = scmp.ne.s32.totalorder %s91, %s107
      %p109 = scmp.eq.s32.totalorder %s19, 0
      %p110 = por %p108, %p109
      %s112 = sadd.s32 %s111, 1
      %p115 = scmp.eq.s32.totalorder %s13, 15
      %p116 = scmp.ne.s32.totalorder %s111, %s113
      %p117 = scmp.eq.s32.totalorder %s13, 0
      %p118 = por %p116, %p117
      %p119 = scmp.ne.s32.totalorder %s111, %s113
      %p120 = scmp.eq.s32.totalorder %s18, 15
      %p121 = por %p119, %p120
      %p122 = scmp.ne.s32.totalorder %s113, %s114
      %p123 = scmp.eq.s32.totalorder %s18, 0
      %p124 = por %p122, %p123
      %p125 = scmp.ne.s32.totalorder %s113, %s114
      %p126 = scmp.eq.s32.totalorder %s19, 15
      %p127 = por %p125, %p126
      %p129 = scmp.ne.s32.totalorder %s114, %s128
      %p130 = scmp.eq.s32.totalorder %s19, 0
      %p131 = por %p129, %p130
      %s132 = ssub.s32 %s20, %s32
      %p133 = scmp.eq.s32.totalorder %s132, 0
      %s135 = sadd.s32 %s134, 1
      %s136 = scalar_select %p133, %s134, %s135
      %p139 = pneg %p133
      %p140 = scmp.eq.s32.totalorder %s13, 15
      %p141 = por %p139, %p140
      %p142 = scmp.ne.s32.totalorder %s134, %s137
      %p143 = scmp.eq.s32.totalorder %s13, 0
      %p144 = por %p142, %p143
      %p145 = scmp.ne.s32.totalorder %s134, %s137
      %p146 = scmp.eq.s32.totalorder %s18, 15
      %p147 = por %p145, %p146
      %p148 = scmp.ne.s32.totalorder %s137, %s138
      %p149 = scmp.eq.s32.totalorder %s18, 0
      %p150 = por %p148, %p149
      %p151 = scmp.ne.s32.totalorder %s137, %s138
      %p152 = scmp.eq.s32.totalorder %s19, 15
      %p153 = por %p151, %p152
      %p155 = scmp.ne.s32.totalorder %s138, %s154
      %p156 = scmp.eq.s32.totalorder %s19, 0
      %p157 = por %p155, %p156
      %p158 = scmp.le.s32.totalorder 1, %s13
      %p159 = scmp.lt.s32.totalorder %s13, 17
      %p160 = pnand %p158, %p159
      %p161 = pneg %p160
      // Predicated region
      $region9: #{tpu_custom_call.1} parent=5 // pred_check
        _
      $region10: #{tpu_custom_call.1} parent=5 // pred_check_branch
        %163 = sbr.rel (%p160) target = $region12
      $region11: #{tpu_custom_call.1} parent=5 // pred_region
        %s164 = ssub.s32 %s13, 1
        // Predicated region
        $region13: #{tpu_custom_call.1} parent=11 // pred_check
          %p165 = pneg %p124
        $region14: #{tpu_custom_call.1} parent=11 // pred_check_branch
          %167 = sbr.rel (%p165) target = $region16
        $region15: #{tpu_custom_call.1} parent=11 // pred_region
          _
        $region16: #{tpu_custom_call.1} parent=11 // pred_fallthru
          _
      $region12: #{tpu_custom_call.1} parent=5 // pred_fallthru
        _
      %p168 = scmp.lt.s32.totalorder %s13, 16
      // Predicated region
      $region17: #{tpu_custom_call.1} parent=5 // pred_check
        %p169 = pneg %p168
      $region18: #{tpu_custom_call.1} parent=5 // pred_check_branch
        %171 = sbr.rel (%p169) target = $region20
      $region19: #{tpu_custom_call.1} parent=5 // pred_region
        // Predicated region
        $region21: #{tpu_custom_call.1} parent=19 // pred_check
          %p172 = pneg %p45
        $region22: #{tpu_custom_call.1} parent=19 // pred_check_branch
          %174 = sbr.rel (%p172) target = $region24
        $region23: #{tpu_custom_call.1} parent=19 // pred_region
          %p175 = scmp.lt.s32.totalorder %s20, 1
          %s176 = scalar_select %p175, %s20, 1
          %s177 = smul.addr %s176, 2
          %s178 = smul.addr %s177, 8
          %s179 = scalar_lea.vmem %s0, %s178
        $region24: #{tpu_custom_call.1} parent=19 // pred_fallthru
          _
        // Predicated region
        $region25: #{tpu_custom_call.1} parent=19 // pred_check
          %p180 = pneg %p71
        $region26: #{tpu_custom_call.1} parent=19 // pred_check_branch
          %182 = sbr.rel (%p180) target = $region28
        $region27: #{tpu_custom_call.1} parent=19 // pred_region
          %p183 = scmp.lt.s32.totalorder %s21, 7
          %s184 = scalar_select %p183, %s21, 7
          %s185 = smul.addr %s184, 4
          %s186 = smul.addr %s185, 4
          %s187 = scalar_lea.vmem %s1, %s186
        $region28: #{tpu_custom_call.1} parent=19 // pred_fallthru
          _
        // Predicated region
        $region29: #{tpu_custom_call.1} parent=19 // pred_check
          %p188 = pneg %p97
        $region30: #{tpu_custom_call.1} parent=19 // pred_check_branch
          %190 = sbr.rel (%p188) target = $region32
        $region31: #{tpu_custom_call.1} parent=19 // pred_region
          %p191 = scmp.lt.s32.totalorder %s21, 7
          %s192 = scalar_select %p191, %s21, 7
          %s193 = smul.addr %s192, 2
          %s194 = scalar_lea.vmem %s2, %s193
        $region32: #{tpu_custom_call.1} parent=19 // pred_fallthru
          _
      $region20: #{tpu_custom_call.1} parent=5 // pred_fallthru
        _
      %p195 = scmp.le.s32.totalorder 1, %s13
      %p196 = scmp.lt.s32.totalorder %s13, 17
      %p197 = pnand %p195, %p196
      %p198 = pneg %p197
      // Predicated region
      $region33: #{tpu_custom_call.1} parent=5 // pred_check
        _
      $region34: #{tpu_custom_call.1} parent=5 // pred_check_branch
        %200 = sbr.rel (%p197) target = $region36
      $region35: #{tpu_custom_call.1} parent=5 // pred_region
        %s201 = ssub.s32 %s13, 1
        %p202 = scmp.lt.s32.totalorder %s22, 1
        %s203 = scalar_select %p202, %s22, 1
        %s204 = smul.addr %s203, 2
        %s205 = smul.addr %s204, 8
        %s206 = scalar_lea.vmem %s0, %s205
        %p207 = pneg %p51
        %p208 = pneg %p48
        %p209 = scmp.lt.s32.totalorder %s23, 7
        %s210 = scalar_select %p209, %s23, 7
        %s211 = smul.addr %s210, 4
        %s212 = smul.addr %s211, 4
        %s213 = scalar_lea.vmem %s1, %s212
        %p214 = pneg %p77
        %p215 = pneg %p74
        %p216 = scmp.lt.s32.totalorder %s23, 7
        %s217 = scalar_select %p216, %s23, 7
        %s218 = smul.addr %s217, 2
        %s219 = scalar_lea.vmem %s2, %s218
        %p220 = pneg %p103
        %p221 = pneg %p100
        %p222 = pneg %p124
        %p223 = pneg %p121
        %p224 = pneg %p150
        %p225 = pneg %p147
        %s226 = sand.u32 %s137, 1
        %s227 = scalar_lea.sflag [#allocation4], %s226
        %s228 = sand.u32 %s137, 1
        %s229 = smul.addr %s228, 16
        %s230 = scalar_lea.vmem [#allocation3], %s229
        %p231 = scmp.lt.s32.totalorder %s22, 1
        %s232 = scalar_select %p231, %s22, 1
        %s233 = smul.addr %s232, 2
        %s234 = smul.addr %s233, 8
        %s235 = scalar_lea.vmem %s0, %s234
        %p236 = scmp.lt.s32.totalorder %s23, 7
        %s237 = scalar_select %p236, %s23, 7
        %s238 = smul.addr %s237, 4
        %s239 = smul.addr %s238, 4
        %s240 = scalar_lea.vmem %s1, %s239
        %p241 = scmp.lt.s32.totalorder %s23, 7
        %s242 = scalar_select %p241, %s23, 7
        %s243 = smul.addr %s242, 2
        %s244 = scalar_lea.vmem %s2, %s243
        %p246 = scmp.eq.s32.totalorder %s23, 0
        // Predicated region
        $region37: #{tpu_custom_call.1} parent=35 // pred_check
          %p247 = pneg %p246
        $region38: #{tpu_custom_call.1} parent=35 // pred_check_branch
          %249 = sbr.rel (%p247) target = $region40
        $region39: #{tpu_custom_call.1} parent=35 // pred_region
          %vm250 = vcmask 261120
          %251 = vst.msk [vmem:[#allocation2] sm:$0xff] %vm250, 0.0
          %252 = vst.msk [vmem:[#allocation2 + $0x8] sm:$0xff] %vm250, 0.0
        $region40: #{tpu_custom_call.1} parent=35 // pred_fallthru
          _
        %v253 = vld [vmem:[%s235] sm:$0xff]
        %v254 = vld [vmem:[%s235 + $0x8] sm:$0xff]
        %v255 = vpack.c.bf16 %v254, %v253
        %v256 = vld [vmem:[%s240] sm:$0xf]
        %v257 = vld [vmem:[%s240 + $0x4] sm:$0xf]
        %v258 = vld [vmem:[%s240 + $0x8] sm:$0xf]
        %v259 = vld [vmem:[%s240 + $0xc] sm:$0xf]
        %v264 = vunpack.c.l.b16 %v256
        %v265 = vunpack.c.l.b16 %v257
        %v266 = vunpack.c.l.b16 %v258
        %v267 = vunpack.c.l.b16 %v259
        %v268 = vpack.c.b16 %v265, %v264
        %v269 = vpack.c.b16 %v267, %v266
        %vm272 = vcmask 261120
        %v274 = vsel %vm272, %v255, 0
        %276 = vmatprep.subr.bf16.mxu0 0
        %277 = vmatpush1.bf16.msra.mxu0 0
        %278 = vmatprep.subr.bf16.mxu0 0
        %279 = vmatpush1.bf16.msra.mxu0 0
        %280 = vmatprep.subr.bf16.mxu0 0
        %281 = vmatpush1.bf16.msra.mxu0 0
        %282 = vmatprep.subr.bf16.mxu0 0
        %283 = vmatpush1.bf16.msra.mxu0 0
        %284 = vmatprep.subr.bf16.mxu0 0
        %285 = vmatpush1.bf16.msra.mxu0 0
        %286 = vmatprep.subr.bf16.mxu0 0
        %287 = vmatpush1.bf16.msra.mxu0 0
        %288 = vmatprep.subr.bf16.mxu0 0
        %289 = vmatpush1.bf16.msra.mxu0 %v269
        %290 = vmatprep.subr.bf16.mxu0 0
        %291 = vmatpush1.bf16.msra.mxu0 %v268
        %292 = vmatprep.subr.bf16.mxu0 0
        %293 = vmatpush2.bf16.msra.mxu0 0
        %294 = vmatprep.subr.bf16.mxu0 0
        %295 = vmatpush2.bf16.msra.mxu0 0
        %296 = vmatprep.subr.bf16.mxu0 0
        %297 = vmatpush2.bf16.msra.mxu0 0
        %298 = vmatprep.subr.bf16.mxu0 0
        %299 = vmatpush2.bf16.msra.mxu0 0
        %300 = vmatprep.subr.bf16.mxu0 0
        %301 = vmatpush2.bf16.msra.mxu0 0
        %302 = vmatprep.subr.bf16.mxu0 0
        %303 = vmatpush2.bf16.msra.mxu0 0
        %304 = vmatprep.subr.bf16.mxu0 0
        %305 = vmatpush2.bf16.msra.mxu0 0
        %306 = vmatprep.subr.bf16.mxu0 0
        %307 = vmatpush2.bf16.msra.mxu0 0
        %308 = vmatprep.mubr.bf16.mxu0 0
        %309 = vmatmul.mubr.bf16.gmra.mxu0 %v274
        %v310 = vpop.f32.mrf.mxu0
        %v311 = vadd.f32 0.0, %v310
        %v312 = vpop.f32.mrf.mxu0
        %v313 = vpop.f32.mrf.mxu0
        %v314 = vadd.f32 0.0, %v313
        %v315 = vpop.f32.mrf.mxu0
        %316 = vdwg.mxu0
        %v317 = vpack.c.bf16 %v314, %v311
        %319 = vrot.lane.b32.xlu0 %v317, 124
        %v320 = vpop.permute.xlu0 %319
        %vm321 = vcmask 31744
        %v323 = vsel %vm321, %v317, 0
        %v326 = vsel %vm321, %v320, 0
        %328 = vmatprep.subr.bf16.mxu0 0
        %329 = vmatpush1.bf16.xpose.msra.mxu0 0
        %330 = vmatprep.subr.bf16.mxu0 0
        %331 = vmatpush1.bf16.xpose.msra.mxu0 0
        %332 = vmatprep.subr.bf16.mxu0 0
        %333 = vmatpush1.bf16.xpose.msra.mxu0 0
        %334 = vmatprep.subr.bf16.mxu0 0
        %335 = vmatpush1.bf16.xpose.msra.mxu0 0
        %336 = vmatprep.subr.bf16.mxu0 0
        %337 = vmatpush1.bf16.xpose.msra.mxu0 0
        %338 = vmatprep.subr.bf16.mxu0 0
        %339 = vmatpush1.bf16.xpose.msra.mxu0 0
        %340 = vmatprep.subr.bf16.mxu0 0
        %341 = vmatpush1.bf16.xpose.msra.mxu0 0
        %342 = vmatprep.subr.bf16.mxu0 0
        %343 = vmatpush1.bf16.xpose.msra.mxu0 %v326
        %344 = vmatprep.subr.bf16.mxu0 0
        %345 = vmatpush2.bf16.xpose.msra.mxu0 0
        %346 = vmatprep.subr.bf16.mxu0 0
        %347 = vmatpush2.bf16.xpose.msra.mxu0 0
        %348 = vmatprep.subr.bf16.mxu0 0
        %349 = vmatpush2.bf16.xpose.msra.mxu0 0
        %350 = vmatprep.subr.bf16.mxu0 0
        %351 = vmatpush2.bf16.xpose.msra.mxu0 0
        %352 = vmatprep.subr.bf16.mxu0 0
        %353 = vmatpush2.bf16.xpose.msra.mxu0 0
        %354 = vmatprep.subr.bf16.mxu0 0
        %355 = vmatpush2.bf16.xpose.msra.mxu0 0
        %356 = vmatprep.subr.bf16.mxu0 0
        %357 = vmatpush2.bf16.xpose.msra.mxu0 0
        %358 = vmatprep.subr.bf16.mxu0 0
        %359 = vmatpush2.bf16.xpose.msra.mxu0 0
        %360 = vmatprep.mubr.bf16.mxu0 0
        %361 = vmatmul.mubr.bf16.gmra.mxu0 %v323
        %v362 = vpop.f32.mrf.mxu0
        %v363 = vadd.f32 0.0, %v362
        %v364 = vpop.f32.mrf.mxu0
        %v365 = vpop.f32.mrf.mxu0
        %v366 = vadd.f32 0.0, %v365
        %v367 = vpop.f32.mrf.mxu0
        %368 = vdwg.mxu0
        %vm369 = vcmask 64512
        %v370 = vsel %vm369, %v363, -inf
        %371 = vmax.xlane.f32.xlu0 %v370
        %v372 = vpop.xlane.xlu0 %371
        %v373 = vsel %vm369, %v366, -inf
        %374 = vmax.xlane.f32.xlu0 %v373
        %v375 = vpop.xlane.xlu0 %374
        %v376 = vsub.f32 -inf, %v372
        %v377 = vsub.f32 -inf, %v375
        %v378 = vmul.f32 %v376, 1.442695
        %v379 = vpow.pop %v378
        %v380 = vmul.f32 %v377, 1.442695
        %v381 = vpow.pop %v380
        %v382 = vsub.f32 %v363, %v372
        %v383 = vsub.f32 %v366, %v375
        %v384 = vmul.f32 %v382, 1.442695
        %v385 = vpow.pop %v384
        %v386 = vmul.f32 %v383, 1.442695
        %v387 = vpow.pop %v386
        %v388 = vmul.f32 %v379, 0.0
        %v389 = vmul.f32 %v381, 0.0
        %v390 = vsel %vm369, %v385, 0.0
        %391 = vadd.xlane.f32.xlu0 %v390
        %v392 = vpop.xlane.xlu0 %391
        %v393 = vsel %vm369, %v387, 0.0
        %394 = vadd.xlane.f32.xlu0 %v393
        %v395 = vpop.xlane.xlu0 %394
        %v396 = vadd.f32 %v388, %v392
        %v397 = vadd.f32 %v389, %v395
        %v398 = vpack.c.bf16 %v387, %v385
        %399 = vrot.lane.b32.xlu0 %v317, 120
        %v400 = vpop.permute.xlu0 %399
        %v402 = vsel %vm369, %v398, 0
        %vm404 = vcmask 1043456
        %v406 = vsel %vm404, %v400, 0
        %408 = vmatprep.subr.bf16.mxu0 0
        %409 = vmatpush1.bf16.msra.mxu0 0
        %410 = vmatprep.subr.bf16.mxu0 0
        %411 = vmatpush1.bf16.msra.mxu0 0
        %412 = vmatprep.subr.bf16.mxu0 0
        %413 = vmatpush1.bf16.msra.mxu0 0
        %414 = vmatprep.subr.bf16.mxu0 0
        %415 = vmatpush1.bf16.msra.mxu0 0
        %416 = vmatprep.subr.bf16.mxu0 0
        %417 = vmatpush1.bf16.msra.mxu0 0
        %418 = vmatprep.subr.bf16.mxu0 0
        %419 = vmatpush1.bf16.msra.mxu0 0
        %420 = vmatprep.subr.bf16.mxu0 0
        %421 = vmatpush1.bf16.msra.mxu0 0
        %422 = vmatprep.subr.bf16.mxu0 0
        %423 = vmatpush1.bf16.msra.mxu0 %v406
        %424 = vmatprep.subr.bf16.mxu0 0
        %425 = vmatpush2.bf16.msra.mxu0 0
        %426 = vmatprep.subr.bf16.mxu0 0
        %427 = vmatpush2.bf16.msra.mxu0 0
        %428 = vmatprep.subr.bf16.mxu0 0
        %429 = vmatpush2.bf16.msra.mxu0 0
        %430 = vmatprep.subr.bf16.mxu0 0
        %431 = vmatpush2.bf16.msra.mxu0 0
        %432 = vmatprep.subr.bf16.mxu0 0
        %433 = vmatpush2.bf16.msra.mxu0 0
        %434 = vmatprep.subr.bf16.mxu0 0
        %435 = vmatpush2.bf16.msra.mxu0 0
        %436 = vmatprep.subr.bf16.mxu0 0
        %437 = vmatpush2.bf16.msra.mxu0 0
        %438 = vmatprep.subr.bf16.mxu0 0
        %439 = vmatpush2.bf16.msra.mxu0 0
        %440 = vmatprep.mubr.bf16.mxu0 0
        %441 = vmatmul.mubr.bf16.gmra.mxu0 %v402
        %v442 = vpop.f32.mrf.mxu0
        %v443 = vadd.f32 0.0, %v442
        %v444 = vpop.f32.mrf.mxu0
        %v445 = vpop.f32.mrf.mxu0
        %v446 = vadd.f32 0.0, %v445
        %v447 = vpop.f32.mrf.mxu0
        %448 = vdwg.mxu0
        %v449 = vadd.f32 %v388, %v443
        %v450 = vadd.f32 %v389, %v446
        %v451 = vrot.slane %v317, 4
        %452 = vrot.lane.b32.xlu0 %v451, 124
        %v453 = vpop.permute.xlu0 %452
        %v455 = vsel %vm321, %v453, 0
        %457 = vmatprep.subr.bf16.mxu0 0
        %458 = vmatpush1.bf16.xpose.msra.mxu0 0
        %459 = vmatprep.subr.bf16.mxu0 0
        %460 = vmatpush1.bf16.xpose.msra.mxu0 0
        %461 = vmatprep.subr.bf16.mxu0 0
        %462 = vmatpush1.bf16.xpose.msra.mxu0 0
        %463 = vmatprep.subr.bf16.mxu0 0
        %464 = vmatpush1.bf16.xpose.msra.mxu0 0
        %465 = vmatprep.subr.bf16.mxu0 0
        %466 = vmatpush1.bf16.xpose.msra.mxu0 0
        %467 = vmatprep.subr.bf16.mxu0 0
        %468 = vmatpush1.bf16.xpose.msra.mxu0 0
        %469 = vmatprep.subr.bf16.mxu0 0
        %470 = vmatpush1.bf16.xpose.msra.mxu0 0
        %471 = vmatprep.subr.bf16.mxu0 0
        %472 = vmatpush1.bf16.xpose.msra.mxu0 %v455
        %473 = vmatprep.subr.bf16.mxu0 0
        %474 = vmatpush2.bf16.xpose.msra.mxu0 0
        %475 = vmatprep.subr.bf16.mxu0 0
        %476 = vmatpush2.bf16.xpose.msra.mxu0 0
        %477 = vmatprep.subr.bf16.mxu0 0
        %478 = vmatpush2.bf16.xpose.msra.mxu0 0
        %479 = vmatprep.subr.bf16.mxu0 0
        %480 = vmatpush2.bf16.xpose.msra.mxu0 0
        %481 = vmatprep.subr.bf16.mxu0 0
        %482 = vmatpush2.bf16.xpose.msra.mxu0 0
        %483 = vmatprep.subr.bf16.mxu0 0
        %484 = vmatpush2.bf16.xpose.msra.mxu0 0
        %485 = vmatprep.subr.bf16.mxu0 0
        %486 = vmatpush2.bf16.xpose.msra.mxu0 0
        %487 = vmatprep.subr.bf16.mxu0 0
        %488 = vmatpush2.bf16.xpose.msra.mxu0 0
        %489 = vmatprep.mubr.bf16.mxu0 0
        %490 = vmatmul.mubr.bf16.gmra.mxu0 %v323
        %v491 = vpop.f32.mrf.mxu0
        %v492 = vadd.f32 0.0, %v491
        %v493 = vpop.f32.mrf.mxu0
        %v494 = vpop.f32.mrf.mxu0
        %v495 = vadd.f32 0.0, %v494
        %v496 = vpop.f32.mrf.mxu0
        %497 = vdwg.mxu0
        %v498 = vsel %vm369, %v492, -inf
        %499 = vmax.xlane.f32.xlu0 %v498
        %v500 = vpop.xlane.xlu0 %499
        %v501 = vsel %vm369, %v495, -inf
        %502 = vmax.xlane.f32.xlu0 %v501
        %v503 = vpop.xlane.xlu0 %502
        %v504 = vmax.f32 %v372, %v500
        %v505 = vmax.f32 %v375, %v503
        %v506 = vsub.f32 %v372, %v504
        %v507 = vsub.f32 %v375, %v505
        %v508 = vmul.f32 %v506, 1.442695
        %v509 = vpow.pop %v508
        %v510 = vmul.f32 %v507, 1.442695
        %v511 = vpow.pop %v510
        %v512 = vsub.f32 %v492, %v504
        %v513 = vsub.f32 %v495, %v505
        %v514 = vmul.f32 %v512, 1.442695
        %v515 = vpow.pop %v514
        %v516 = vmul.f32 %v513, 1.442695
        %v517 = vpow.pop %v516
        %v518 = vmul.f32 %v509, %v396
        %v519 = vmul.f32 %v511, %v397
        %v520 = vsel %vm369, %v515, 0.0
        %521 = vadd.xlane.f32.xlu0 %v520
        %v522 = vpop.xlane.xlu0 %521
        %v523 = vsel %vm369, %v517, 0.0
        %524 = vadd.xlane.f32.xlu0 %v523
        %v525 = vpop.xlane.xlu0 %524
        %v526 = vadd.f32 %v518, %v522
        %v527 = vadd.f32 %v519, %v525
        %v528 = vmul.f32 %v509, %v449
        %v529 = vmul.f32 %v511, %v450
        %v530 = vpack.c.bf16 %v517, %v515
        %531 = vrot.lane.b32.xlu0 %v451, 120
        %v532 = vpop.permute.xlu0 %531
        %v534 = vsel %vm369, %v530, 0
        %v537 = vsel %vm404, %v532, 0
        %539 = vmatprep.subr.bf16.mxu0 0
        %540 = vmatpush1.bf16.msra.mxu0 0
        %541 = vmatprep.subr.bf16.mxu0 0
        %542 = vmatpush1.bf16.msra.mxu0 0
        %543 = vmatprep.subr.bf16.mxu0 0
        %544 = vmatpush1.bf16.msra.mxu0 0
        %545 = vmatprep.subr.bf16.mxu0 0
        %546 = vmatpush1.bf16.msra.mxu0 0
        %547 = vmatprep.subr.bf16.mxu0 0
        %548 = vmatpush1.bf16.msra.mxu0 0
        %549 = vmatprep.subr.bf16.mxu0 0
        %550 = vmatpush1.bf16.msra.mxu0 0
        %551 = vmatprep.subr.bf16.mxu0 0
        %552 = vmatpush1.bf16.msra.mxu0 0
        %553 = vmatprep.subr.bf16.mxu0 0
        %554 = vmatpush1.bf16.msra.mxu0 %v537
        %555 = vmatprep.subr.bf16.mxu0 0
        %556 = vmatpush2.bf16.msra.mxu0 0
        %557 = vmatprep.subr.bf16.mxu0 0
        %558 = vmatpush2.bf16.msra.mxu0 0
        %559 = vmatprep.subr.bf16.mxu0 0
        %560 = vmatpush2.bf16.msra.mxu0 0
        %561 = vmatprep.subr.bf16.mxu0 0
        %562 = vmatpush2.bf16.msra.mxu0 0
        %563 = vmatprep.subr.bf16.mxu0 0
        %564 = vmatpush2.bf16.msra.mxu0 0
        %565 = vmatprep.subr.bf16.mxu0 0
        %566 = vmatpush2.bf16.msra.mxu0 0
        %567 = vmatprep.subr.bf16.mxu0 0
        %568 = vmatpush2.bf16.msra.mxu0 0
        %569 = vmatprep.subr.bf16.mxu0 0
        %570 = vmatpush2.bf16.msra.mxu0 0
        %571 = vmatprep.mubr.bf16.mxu0 0
        %572 = vmatmul.mubr.bf16.gmra.mxu0 %v534
        %v573 = vpop.f32.mrf.mxu0
        %v574 = vadd.f32 0.0, %v573
        %v575 = vpop.f32.mrf.mxu0
        %v576 = vpop.f32.mrf.mxu0
        %v577 = vadd.f32 0.0, %v576
        %v578 = vpop.f32.mrf.mxu0
        %579 = vdwg.mxu0
        %v580 = vadd.f32 %v528, %v574
        %v581 = vadd.f32 %v529, %v577
        %v582 = vrcp.pop %v526
        %v583 = vrcp.pop %v527
        %v584 = vmul.f32 %v580, %v582
        %v585 = vmul.f32 %v581, %v583
        %v586 = vld [vmem:[#allocation2] sm:$0xff]
        %v587 = vld [vmem:[#allocation2 + $0x8] sm:$0xff]
        %v588 = vpack.c.bf16 %v585, %v584
        %v589 = vld [vmem:[%s244] sm:$0x3]
        %v591 = vsel %vm321, %v588, 0
        %vm593 = vcmask 1041408
        %v595 = vsel %vm593, %v589, 0
        %597 = vmatprep.subr.bf16.mxu0 0
        %598 = vmatpush1.bf16.msra.mxu0 0
        %599 = vmatprep.subr.bf16.mxu0 0
        %600 = vmatpush1.bf16.msra.mxu0 0
        %601 = vmatprep.subr.bf16.mxu0 0
        %602 = vmatpush1.bf16.msra.mxu0 0
        %603 = vmatprep.subr.bf16.mxu0 0
        %604 = vmatpush1.bf16.msra.mxu0 0
        %605 = vmatprep.subr.bf16.mxu0 0
        %606 = vmatpush1.bf16.msra.mxu0 0
        %607 = vmatprep.subr.bf16.mxu0 0
        %608 = vmatpush1.bf16.msra.mxu0 0
        %609 = vmatprep.subr.bf16.mxu0 0
        %610 = vmatpush1.bf16.msra.mxu0 0
        %611 = vmatprep.subr.bf16.mxu0 0
        %612 = vmatpush1.bf16.msra.mxu0 %v595
        %613 = vmatprep.subr.bf16.mxu0 0
        %614 = vmatpush2.bf16.msra.mxu0 0
        %615 = vmatprep.subr.bf16.mxu0 0
        %616 = vmatpush2.bf16.msra.mxu0 0
        %617 = vmatprep.subr.bf16.mxu0 0
        %618 = vmatpush2.bf16.msra.mxu0 0
        %619 = vmatprep.subr.bf16.mxu0 0
        %620 = vmatpush2.bf16.msra.mxu0 0
        %621 = vmatprep.subr.bf16.mxu0 0
        %622 = vmatpush2.bf16.msra.mxu0 0
        %623 = vmatprep.subr.bf16.mxu0 0
        %624 = vmatpush2.bf16.msra.mxu0 0
        %625 = vmatprep.subr.bf16.mxu0 0
        %626 = vmatpush2.bf16.msra.mxu0 0
        %627 = vmatprep.subr.bf16.mxu0 0
        %628 = vmatpush2.bf16.msra.mxu0 0
        %629 = vmatprep.mubr.bf16.mxu0 0
        %630 = vmatmul.mubr.bf16.gmra.mxu0 %v591
        %v631 = vpop.f32.mrf.mxu0
        %v632 = vadd.f32 0.0, %v631
        %v633 = vpop.f32.mrf.mxu0
        %v634 = vpop.f32.mrf.mxu0
        %v635 = vadd.f32 0.0, %v634
        %v636 = vpop.f32.mrf.mxu0
        %637 = vdwg.mxu0
        %v638 = vadd.f32 %v586, %v632
        %v639 = vadd.f32 %v587, %v635
        %640 = vst.msk [vmem:[#allocation2] sm:$0xff] %vm272, %v638
        %641 = vst.msk [vmem:[#allocation2 + $0x8] sm:$0xff] %vm272, %v639
        %p642 = scmp.eq.s32.totalorder %s23, 7
        // Predicated region
        $region41: #{tpu_custom_call.1} parent=35 // pred_check
          %p643 = pneg %p642
        $region42: #{tpu_custom_call.1} parent=35 // pred_check_branch
          %645 = sbr.rel (%p643) target = $region44
        $region43: #{tpu_custom_call.1} parent=35 // pred_region
          %v646 = vld [vmem:[#allocation2] sm:$0xff]
          %v647 = vld [vmem:[#allocation2 + $0x8] sm:$0xff]
          %v648 = vld [vmem:[%s3] sm:$0x1]
          %v650 = vlaneseq
          %v651 = vshrl.u32 %v650, 7
          %v652 = vsub.s32 0, %v651
          %v653 = vrot.slane %v648, %v652
          %v655 = vadd.f32 %v646, %v653
          %v656 = vadd.f32 %v647, %v653
          %657 = vst.msk [vmem:[%s230] sm:$0xff] %vm272, %v655
          %658 = vst.msk [vmem:[%s230 + $0x8] sm:$0xff] %vm272, %v656
        $region44: #{tpu_custom_call.1} parent=35 // pred_fallthru
          _
        %s659 = sand.u32 %s137, 1
        %s660 = scalar_lea.sflag [#allocation4], %s659
        %s661 = sand.u32 %s137, 1
        %s662 = smul.addr %s661, 16
        %s663 = scalar_lea.vmem [#allocation3], %s662
        // Predicated region
        $region45: #{tpu_custom_call.1} parent=35 // pred_check
          %p664 = pneg %p147
        $region46: #{tpu_custom_call.1} parent=35 // pred_check_branch
          %666 = sbr.rel (%p664) target = $region48
        $region47: #{tpu_custom_call.1} parent=35 // pred_region
          %s668 = ssub.s32 256, 256
          %669 = vsyncadd %s660, %s668
          %s670 = smul.addr %s22, 2
          %s671 = smul.addr %s670, 128
          %s672 = scalar_lea.hbm %s4, %s671
          %s673 = sshll.u32 %s663, 4
          %s674 = int_to_ptr.vmem [resolvable:$true] %s673
          %679 = dma.vmem_to_hbm [thread:$0]  %s674, 256, %s672, %s660, 128, 128, 8
        $region48: #{tpu_custom_call.1} parent=35 // pred_fallthru
          _
      $region36: #{tpu_custom_call.1} parent=5 // pred_fallthru
        _
      %p680 = scmp.le.s32.totalorder 2, %s13
      // Predicated region
      $region49: #{tpu_custom_call.1} parent=5 // pred_check
        %p681 = pneg %p680
      $region50: #{tpu_custom_call.1} parent=5 // pred_check_branch
        %683 = sbr.rel (%p681) target = $region52
      $region51: #{tpu_custom_call.1} parent=5 // pred_region
        %s684 = ssub.s32 %s13, 2
        // Predicated region
        $region53: #{tpu_custom_call.1} parent=51 // pred_check
          %p685 = pneg %p153
        $region54: #{tpu_custom_call.1} parent=51 // pred_check_branch
          %687 = sbr.rel (%p685) target = $region56
        $region55: #{tpu_custom_call.1} parent=51 // pred_region
          %s688 = sand.u32 %s138, 1
          %s689 = scalar_lea.sflag [#allocation4], %s688
          %s690 = sand.u32 %s138, 1
          %s691 = smul.addr %s690, 16
          %s692 = scalar_lea.vmem [#allocation3], %s691
          %693 = dma.done %s689, 256
        $region56: #{tpu_custom_call.1} parent=51 // pred_fallthru
          _
      $region52: #{tpu_custom_call.1} parent=5 // pred_fallthru
        _
    $region6: #{tpu_custom_call.1} parent=1 // loop_footer
      %s17 = sadd.s32 1, %s13
    $region7: #{tpu_custom_call.1} parent=1 // loop_footer_branch
      %12 = sbr.rel target = $region3
    $region8: #{tpu_custom_call.1} parent=1 // loop_exit
      _
    %694 = vsyncpa [#allocation4], 1
    %s695 = scalar_lea.sflag [#allocation4], 1
    %696 = vsyncpa %s695, 1

</llo_original>
